<compile_context>
chip_gen: v6e
topology: v6e:2x2x1
jax: 0.10.0
libtpu: 0.0.40
codegen_flags: <defaults>
</compile_context>

<pallas_src>
import functools

import jax
import jax.numpy as jnp
from jax.experimental import pallas as pl
from jax.experimental.pallas import tpu as pltpu

EPS = 1e-5


def _conv3x3_im2col(xp, w_flat, mask_l, mask_r, *, W, HW, mxu_dtype):
    """3x3 'same' conv on a flat-padded image.

    xp:      (C, HW + 2*(W+1)) f32 -- flattened image with W+1 zeros per side,
             so every 3x3 tap is a contiguous lane slice (top/bottom taps land
             in the zero pad automatically).
    w_flat:  (Cout, 9*C) f32, row order (dy, dx, cin).
    mask_l:  (1, HW) f32, 0 where w == 0     (kills row wrap for dx == 0 taps)
    mask_r:  (1, HW) f32, 0 where w == W-1   (kills row wrap for dx == 2 taps)
    returns: (Cout, HW) f32
    """
    taps = []
    for dy in range(3):
        for dx in range(3):
            start = dy * W + dx                       # static lane offset
            t = xp[:, start:start + HW]               # (C, HW)
            if dx == 0:
                t = t * mask_l
            elif dx == 2:
                t = t * mask_r
            taps.append(t)
    patches = jnp.concatenate(taps, axis=0)           # (9*C, HW) im2col slab
    return jax.lax.dot_general(
        w_flat.astype(mxu_dtype), patches.astype(mxu_dtype),
        (((1,), (0,)), ((), ())),
        preferred_element_type=jnp.float32)           # (Cout, HW) f32


def _instance_norm_1pass(y, HW):
    """Per-row (= per-channel) normalization over lanes; biased variance."""
    inv_hw = 1.0 / HW
    s1 = jnp.sum(y, axis=1, keepdims=True)            # (C, 1)
    s2 = jnp.sum(y * y, axis=1, keepdims=True)        # (C, 1)
    mean = s1 * inv_hw
    var = jnp.maximum(s2 * inv_hw - mean * mean, 0.0)
    return (y - mean) * jax.lax.rsqrt(var + EPS)


def _residual_block_kernel(xp_ref, w1_ref, w2_ref, ml_ref, mr_ref, o_ref,
                           *, W, HW, PAD, nb, mxu_dtype):
    w1f = w1_ref[...]
    w2f = w2_ref[...]
    mask_l = ml_ref[...]
    mask_r = mr_ref[...]

    for i in range(nb):                                # static unroll over images
        xp = xp_ref[i].astype(jnp.float32)             # (C, HW + 2*PAD)
        C = xp.shape[0]

        x_center = xp[:, PAD:PAD + HW]                 # residual input (C, HW)

        # conv1 (bias dropped: exactly cancelled by the following InstanceNorm)
        y = _conv3x3_im2col(xp, w1f, mask_l, mask_r,
                            W=W, HW=HW, mxu_dtype=mxu_dtype)
        y = _instance_norm_1pass(y, HW)
        y = jnp.maximum(y, 0.0)                        # ReLU

        # conv2: re-pad the intermediate along lanes (single small concat)
        zpad = jnp.zeros((C, PAD), jnp.float32)
        yp = jnp.concatenate([zpad, y, zpad], axis=1)  # (C, HW + 2*PAD)
        y = _conv3x3_im2col(yp, w2f, mask_l, mask_r,
                            W=W, HW=HW, mxu_dtype=mxu_dtype)
        y = _instance_norm_1pass(y, HW)

        o_ref[i] = (x_center + y).astype(o_ref.dtype)  # residual add


def residual_block(x_nchw, w1, b1, w2, b2, *, images_per_step=1,
                   mxu_dtype=jnp.float32):
    """x_nchw: (N, C, H, W); w*: (Cout, Cin, 3, 3) PyTorch layout; b*: (C,).

    Biases are accepted for API parity but unused: Conv -> InstanceNorm(affine=False)
    makes a per-channel constant bias cancel exactly.
    """
    del b1, b2
    N, C, H, W = x_nchw.shape
    HW = H * W
    PAD = W + 1
    HWp = HW + 2 * PAD
    nb = images_per_step
    assert N % nb == 0, "images_per_step must divide the batch size"

    # NCHW -> (N, C, H*W): channels on sublanes, flattened spatial on lanes.
    x_flat = x_nchw.reshape(N, C, HW).astype(jnp.float32)
    # Flat zero padding (W+1 per side): every 3x3 tap is a contiguous slice.
    x_pad = jnp.pad(x_flat, ((0, 0), (0, 0), (PAD, PAD)))

    # (Cout, Cin, 3, 3) -> (Cout, 9*Cin), row order (dy, dx, cin).
    w1f = jnp.transpose(w1, (0, 2, 3, 1)).reshape(C, 9 * C).astype(jnp.float32)
    w2f = jnp.transpose(w2, (0, 2, 3, 1)).reshape(C, 9 * C).astype(jnp.float32)

    # Row-wrap masks for the dx = -1 / +1 taps (w = flat_idx % W), precomputed.
    col = jnp.arange(HW, dtype=jnp.int32) % W
    mask_l = (col != 0).astype(jnp.float32).reshape(1, HW)
    mask_r = (col != W - 1).astype(jnp.float32).reshape(1, HW)

    kernel = functools.partial(_residual_block_kernel, W=W, HW=HW, PAD=PAD,
                               nb=nb, mxu_dtype=mxu_dtype)

    out_flat = pl.pallas_call(
        kernel,
        out_shape=jax.ShapeDtypeStruct((N, C, HW), x_nchw.dtype),
        grid_spec=pltpu.PrefetchScalarGridSpec(
            num_scalar_prefetch=0,
            grid=(N // nb,),
            in_specs=[
                pl.BlockSpec((nb, C, HWp), lambda n: (n, 0, 0)),
                pl.BlockSpec((C, 9 * C), lambda n: (0, 0)),
                pl.BlockSpec((C, 9 * C), lambda n: (0, 0)),
                pl.BlockSpec((1, HW), lambda n: (0, 0)),
                pl.BlockSpec((1, HW), lambda n: (0, 0)),
            ],
            out_specs=pl.BlockSpec((nb, C, HW), lambda n: (n, 0, 0)),
        ),
        compiler_params=pltpu.CompilerParams(
            dimension_semantics=("parallel",)),
        # NOTE: at these tiny shapes the default scoped-VMEM limit is ample; at
        # production resolutions add H-strip tiling (two-pass IN stats) and raise
        # vmem_limit_bytes so the working set also fits v7x's 64 MiB VMEM.
    )(x_pad, w1f, w2f, mask_l, mask_r)

    return out_flat.reshape(N, C, H, W)


# ------------------------- pure-JAX reference (with biases) -----------------
def residual_block_ref(x, w1, b1, w2, b2):
    def conv(x, w, b):
        y = jax.lax.conv_general_dilated(
            x, w, window_strides=(1, 1), padding=((1, 1), (1, 1)),
            dimension_numbers=('NCHW', 'OIHW', 'NCHW'))
        return y + b.reshape(1, -1, 1, 1)

    def inorm(x):
        mean = jnp.mean(x, axis=(2, 3), keepdims=True)
        var = jnp.mean((x - mean) ** 2, axis=(2, 3), keepdims=True)
        return (x - mean) / jnp.sqrt(var + EPS)

    h = jnp.maximum(inorm(conv(x, w1, b1)), 0.0)
    h = inorm(conv(h, w2, b2))
    return x + h


if __name__ == "__main__":
    N, C, H, W = 2, 4, 16, 16
    key = jax.random.PRNGKey(0)
    kx, kw1, kb1, kw2, kb2 = jax.random.split(key, 5)

    x = jax.random.normal(kx, (N, C, H, W), jnp.float32)
    # Conv2d(dim, dim, 3) parameter shapes (PyTorch layout)
    w1 = jax.random.normal(kw1, (C, C, 3, 3), jnp.float32) * 0.1
    b1 = jax.random.normal(kb1, (C,), jnp.float32) * 0.1
    w2 = jax.random.normal(kw2, (C, C, 3, 3), jnp.float32) * 0.1
    b2 = jax.random.normal(kb2, (C,), jnp.float32) * 0.1

    out = jax.block_until_ready(residual_block(x, w1, b1, w2, b2))
    ref = jax.block_until_ready(residual_block_ref(x, w1, b1, w2, b2))

    assert out.shape == (N, C, H, W)
    assert jnp.allclose(out, ref, atol=1e-4, rtol=1e-4), "mismatch vs reference"

    print("KERNEL_OK")
</pallas_src>

<mosaic_0001>
module attributes {stable_mosaic.version = 11 : i64} {
  func.func @_residual_block_kernel(%arg0: i32, %arg1: memref<1x4x290xf32, #tpu.memory_space<vmem>>, %arg2: memref<4x36xf32, #tpu.memory_space<vmem>>, %arg3: memref<4x36xf32, #tpu.memory_space<vmem>>, %arg4: memref<1x256xf32, #tpu.memory_space<vmem>>, %arg5: memref<1x256xf32, #tpu.memory_space<vmem>>, %arg6: memref<1x4x256xf32, #tpu.memory_space<vmem>>) attributes {dimension_semantics = [#tpu.dimension_semantics<parallel>], iteration_bounds = array<i64: 2>, scalar_prefetch = 0 : i64, scratch_operands = 0 : i64, tpu.core_type = #tpu.core_type<tc>, window_params = [{transform_indices = @transform_0, window_bounds = array<i64: 1, 4, 290>}, {pipeline_mode = #tpu.pipeline_mode<synchronous>, transform_indices = @transform_1, window_bounds = array<i64: 4, 36>}, {pipeline_mode = #tpu.pipeline_mode<synchronous>, transform_indices = @transform_2, window_bounds = array<i64: 4, 36>}, {pipeline_mode = #tpu.pipeline_mode<synchronous>, transform_indices = @transform_3, window_bounds = array<i64: 1, 256>}, {pipeline_mode = #tpu.pipeline_mode<synchronous>, transform_indices = @transform_4, window_bounds = array<i64: 1, 256>}, {transform_indices = @transform_5, window_bounds = array<i64: 1, 4, 256>}]} {
    %c0 = arith.constant 0 : index
    %c0_0 = arith.constant 0 : index
    %0 = vector.load %arg2[%c0, %c0_0] : memref<4x36xf32, #tpu.memory_space<vmem>>, vector<4x36xf32>
    %c0_1 = arith.constant 0 : index
    %c0_2 = arith.constant 0 : index
    %1 = vector.load %arg3[%c0_1, %c0_2] : memref<4x36xf32, #tpu.memory_space<vmem>>, vector<4x36xf32>
    %c0_3 = arith.constant 0 : index
    %c0_4 = arith.constant 0 : index
    %2 = vector.load %arg4[%c0_3, %c0_4] : memref<1x256xf32, #tpu.memory_space<vmem>>, vector<1x256xf32>
    %c0_5 = arith.constant 0 : index
    %c0_6 = arith.constant 0 : index
    %3 = vector.load %arg5[%c0_5, %c0_6] : memref<1x256xf32, #tpu.memory_space<vmem>>, vector<1x256xf32>
    %c0_7 = arith.constant 0 : index
    %c0_8 = arith.constant 0 : index
    %c0_9 = arith.constant 0 : index
    %4 = vector.load %arg1[%c0_7, %c0_8, %c0_9] : memref<1x4x290xf32, #tpu.memory_space<vmem>>, vector<1x4x290xf32>
    %5 = vector.shape_cast %4 : vector<1x4x290xf32> to vector<4x290xf32>
    %6 = vector.extract_strided_slice %5 {offsets = [0, 17], sizes = [4, 256], strides = [1, 1]} : vector<4x290xf32> to vector<4x256xf32>
    %7 = vector.extract_strided_slice %5 {offsets = [0, 0], sizes = [4, 256], strides = [1, 1]} : vector<4x290xf32> to vector<4x256xf32>
    %8 = vector.broadcast %2 : vector<1x256xf32> to vector<4x256xf32>
    %9 = arith.mulf %7, %8 : vector<4x256xf32>
    %10 = vector.extract_strided_slice %5 {offsets = [0, 1], sizes = [4, 256], strides = [1, 1]} : vector<4x290xf32> to vector<4x256xf32>
    %11 = vector.extract_strided_slice %5 {offsets = [0, 2], sizes = [4, 256], strides = [1, 1]} : vector<4x290xf32> to vector<4x256xf32>
    %12 = vector.broadcast %3 : vector<1x256xf32> to vector<4x256xf32>
    %13 = arith.mulf %11, %12 : vector<4x256xf32>
    %14 = vector.extract_strided_slice %5 {offsets = [0, 16], sizes = [4, 256], strides = [1, 1]} : vector<4x290xf32> to vector<4x256xf32>
    %15 = vector.broadcast %2 : vector<1x256xf32> to vector<4x256xf32>
    %16 = arith.mulf %14, %15 : vector<4x256xf32>
    %17 = vector.extract_strided_slice %5 {offsets = [0, 17], sizes = [4, 256], strides = [1, 1]} : vector<4x290xf32> to vector<4x256xf32>
    %18 = vector.extract_strided_slice %5 {offsets = [0, 18], sizes = [4, 256], strides = [1, 1]} : vector<4x290xf32> to vector<4x256xf32>
    %19 = vector.broadcast %3 : vector<1x256xf32> to vector<4x256xf32>
    %20 = arith.mulf %18, %19 : vector<4x256xf32>
    %21 = vector.extract_strided_slice %5 {offsets = [0, 32], sizes = [4, 256], strides = [1, 1]} : vector<4x290xf32> to vector<4x256xf32>
    %22 = vector.broadcast %2 : vector<1x256xf32> to vector<4x256xf32>
    %23 = arith.mulf %21, %22 : vector<4x256xf32>
    %24 = vector.extract_strided_slice %5 {offsets = [0, 33], sizes = [4, 256], strides = [1, 1]} : vector<4x290xf32> to vector<4x256xf32>
    %25 = vector.extract_strided_slice %5 {offsets = [0, 34], sizes = [4, 256], strides = [1, 1]} : vector<4x290xf32> to vector<4x256xf32>
    %26 = vector.broadcast %3 : vector<1x256xf32> to vector<4x256xf32>
    %27 = arith.mulf %25, %26 : vector<4x256xf32>
    %28 = tpu.concatenate %9, %10, %13, %16, %17, %20, %23, %24, %27 in 0 : vector<4x256xf32>, vector<4x256xf32>, vector<4x256xf32>, vector<4x256xf32>, vector<4x256xf32>, vector<4x256xf32>, vector<4x256xf32>, vector<4x256xf32>, vector<4x256xf32> -> vector<36x256xf32>
    %cst = arith.constant dense<0.000000e+00> : vector<4x256xf32>
    %29 = tpu.matmul %0, %28, %cst {dimension_numbers = #tpu.dot_dimension_numbers<[1], [0], [0], [1], [0, 0, 1, 1], [], []>} : vector<4x36xf32>, vector<36x256xf32>, vector<4x256xf32> -> vector<4x256xf32>
    %cst_10 = arith.constant dense<0.000000e+00> : vector<4xf32>
    %30 = vector.multi_reduction <add>, %29, %cst_10 [1] : vector<4x256xf32> to vector<4xf32>
    %31 = vector.shape_cast %30 : vector<4xf32> to vector<4x1xf32>
    %32 = arith.mulf %29, %29 : vector<4x256xf32>
    %cst_11 = arith.constant dense<0.000000e+00> : vector<4xf32>
    %33 = vector.multi_reduction <add>, %32, %cst_11 [1] : vector<4x256xf32> to vector<4xf32>
    %34 = vector.shape_cast %33 : vector<4xf32> to vector<4x1xf32>
    %cst_12 = arith.constant 3.906250e-03 : f32
    %35 = vector.broadcast %cst_12 : f32 to vector<4x1xf32>
    %36 = arith.mulf %31, %35 : vector<4x1xf32>
    %cst_13 = arith.constant 3.906250e-03 : f32
    %37 = vector.broadcast %cst_13 : f32 to vector<4x1xf32>
    %38 = arith.mulf %34, %37 : vector<4x1xf32>
    %39 = arith.mulf %36, %36 : vector<4x1xf32>
    %40 = arith.subf %38, %39 : vector<4x1xf32>
    %cst_14 = arith.constant 0.000000e+00 : f32
    %41 = vector.broadcast %cst_14 : f32 to vector<4x1xf32>
    %42 = arith.maximumf %40, %41 : vector<4x1xf32>
    %43 = vector.broadcast %36 : vector<4x1xf32> to vector<4x256xf32>
    %44 = arith.subf %29, %43 : vector<4x256xf32>
    %cst_15 = arith.constant 9.99999974E-6 : f32
    %45 = vector.broadcast %cst_15 : f32 to vector<4x1xf32>
    %46 = arith.addf %42, %45 : vector<4x1xf32>
    %47 = math.rsqrt %46 : vector<4x1xf32>
    %48 = vector.broadcast %47 : vector<4x1xf32> to vector<4x256xf32>
    %49 = arith.mulf %44, %48 : vector<4x256xf32>
    %cst_16 = arith.constant 0.000000e+00 : f32
    %50 = vector.broadcast %cst_16 : f32 to vector<4x256xf32>
    %51 = arith.maximumf %49, %50 : vector<4x256xf32>
    %cst_17 = arith.constant 0.000000e+00 : f32
    %52 = vector.broadcast %cst_17 : f32 to vector<4x17xf32>
    %53 = tpu.concatenate %52, %51, %52 in 1 : vector<4x17xf32>, vector<4x256xf32>, vector<4x17xf32> -> vector<4x290xf32>
    %54 = vector.extract_strided_slice %53 {offsets = [0, 0], sizes = [4, 256], strides = [1, 1]} : vector<4x290xf32> to vector<4x256xf32>
    %55 = vector.broadcast %2 : vector<1x256xf32> to vector<4x256xf32>
    %56 = arith.mulf %54, %55 : vector<4x256xf32>
    %57 = vector.extract_strided_slice %53 {offsets = [0, 1], sizes = [4, 256], strides = [1, 1]} : vector<4x290xf32> to vector<4x256xf32>
    %58 = vector.extract_strided_slice %53 {offsets = [0, 2], sizes = [4, 256], strides = [1, 1]} : vector<4x290xf32> to vector<4x256xf32>
    %59 = vector.broadcast %3 : vector<1x256xf32> to vector<4x256xf32>
    %60 = arith.mulf %58, %59 : vector<4x256xf32>
    %61 = vector.extract_strided_slice %53 {offsets = [0, 16], sizes = [4, 256], strides = [1, 1]} : vector<4x290xf32> to vector<4x256xf32>
    %62 = vector.broadcast %2 : vector<1x256xf32> to vector<4x256xf32>
    %63 = arith.mulf %61, %62 : vector<4x256xf32>
    %64 = vector.extract_strided_slice %53 {offsets = [0, 17], sizes = [4, 256], strides = [1, 1]} : vector<4x290xf32> to vector<4x256xf32>
    %65 = vector.extract_strided_slice %53 {offsets = [0, 18], sizes = [4, 256], strides = [1, 1]} : vector<4x290xf32> to vector<4x256xf32>
    %66 = vector.broadcast %3 : vector<1x256xf32> to vector<4x256xf32>
    %67 = arith.mulf %65, %66 : vector<4x256xf32>
    %68 = vector.extract_strided_slice %53 {offsets = [0, 32], sizes = [4, 256], strides = [1, 1]} : vector<4x290xf32> to vector<4x256xf32>
    %69 = vector.broadcast %2 : vector<1x256xf32> to vector<4x256xf32>
    %70 = arith.mulf %68, %69 : vector<4x256xf32>
    %71 = vector.extract_strided_slice %53 {offsets = [0, 33], sizes = [4, 256], strides = [1, 1]} : vector<4x290xf32> to vector<4x256xf32>
    %72 = vector.extract_strided_slice %53 {offsets = [0, 34], sizes = [4, 256], strides = [1, 1]} : vector<4x290xf32> to vector<4x256xf32>
    %73 = vector.broadcast %3 : vector<1x256xf32> to vector<4x256xf32>
    %74 = arith.mulf %72, %73 : vector<4x256xf32>
    %75 = tpu.concatenate %56, %57, %60, %63, %64, %67, %70, %71, %74 in 0 : vector<4x256xf32>, vector<4x256xf32>, vector<4x256xf32>, vector<4x256xf32>, vector<4x256xf32>, vector<4x256xf32>, vector<4x256xf32>, vector<4x256xf32>, vector<4x256xf32> -> vector<36x256xf32>
    %cst_18 = arith.constant dense<0.000000e+00> : vector<4x256xf32>
    %76 = tpu.matmul %1, %75, %cst_18 {dimension_numbers = #tpu.dot_dimension_numbers<[1], [0], [0], [1], [0, 0, 1, 1], [], []>} : vector<4x36xf32>, vector<36x256xf32>, vector<4x256xf32> -> vector<4x256xf32>
    %cst_19 = arith.constant dense<0.000000e+00> : vector<4xf32>
    %77 = vector.multi_reduction <add>, %76, %cst_19 [1] : vector<4x256xf32> to vector<4xf32>
    %78 = vector.shape_cast %77 : vector<4xf32> to vector<4x1xf32>
    %79 = arith.mulf %76, %76 : vector<4x256xf32>
    %cst_20 = arith.constant dense<0.000000e+00> : vector<4xf32>
    %80 = vector.multi_reduction <add>, %79, %cst_20 [1] : vector<4x256xf32> to vector<4xf32>
    %81 = vector.shape_cast %80 : vector<4xf32> to vector<4x1xf32>
    %cst_21 = arith.constant 3.906250e-03 : f32
    %82 = vector.broadcast %cst_21 : f32 to vector<4x1xf32>
    %83 = arith.mulf %78, %82 : vector<4x1xf32>
    %cst_22 = arith.constant 3.906250e-03 : f32
    %84 = vector.broadcast %cst_22 : f32 to vector<4x1xf32>
    %85 = arith.mulf %81, %84 : vector<4x1xf32>
    %86 = arith.mulf %83, %83 : vector<4x1xf32>
    %87 = arith.subf %85, %86 : vector<4x1xf32>
    %cst_23 = arith.constant 0.000000e+00 : f32
    %88 = vector.broadcast %cst_23 : f32 to vector<4x1xf32>
    %89 = arith.maximumf %87, %88 : vector<4x1xf32>
    %90 = vector.broadcast %83 : vector<4x1xf32> to vector<4x256xf32>
    %91 = arith.subf %76, %90 : vector<4x256xf32>
    %cst_24 = arith.constant 9.99999974E-6 : f32
    %92 = vector.broadcast %cst_24 : f32 to vector<4x1xf32>
    %93 = arith.addf %89, %92 : vector<4x1xf32>
    %94 = math.rsqrt %93 : vector<4x1xf32>
    %95 = vector.broadcast %94 : vector<4x1xf32> to vector<4x256xf32>
    %96 = arith.mulf %91, %95 : vector<4x256xf32>
    %97 = arith.addf %6, %96 : vector<4x256xf32>
    %c0_25 = arith.constant 0 : index
    %c0_26 = arith.constant 0 : index
    %c0_27 = arith.constant 0 : index
    %98 = vector.load %arg6[%c0_25, %c0_26, %c0_27] : memref<1x4x256xf32, #tpu.memory_space<vmem>>, vector<1x4x256xf32>
    %99 = vector.shape_cast %98 : vector<1x4x256xf32> to vector<4x256xf32>
    %100 = vector.shape_cast %97 : vector<4x256xf32> to vector<1x4x256xf32>
    tpu.vector_store %arg6[%c0_25, %c0_26, %c0_27], %100 {strides = array<i32>} : memref<1x4x256xf32, #tpu.memory_space<vmem>>, vector<1x4x256xf32>,
    return
  }
  func.func @transform_0(%arg0: i32) -> (i32, i32, i32) {
    %c0_i32 = arith.constant 0 : i32
    %c0_i32_0 = arith.constant 0 : i32
    %c0_i32_1 = arith.constant 0 : i32
    return %arg0, %c0_i32, %c0_i32_0 : i32, i32, i32
  }
  func.func @transform_1(%arg0: i32) -> (i32, i32) {
    %c0_i32 = arith.constant 0 : i32
    %c0_i32_0 = arith.constant 0 : i32
    %c0_i32_1 = arith.constant 0 : i32
    return %c0_i32, %c0_i32_0 : i32, i32
  }
  func.func @transform_2(%arg0: i32) -> (i32, i32) {
    %c0_i32 = arith.constant 0 : i32
    %c0_i32_0 = arith.constant 0 : i32
    %c0_i32_1 = arith.constant 0 : i32
    return %c0_i32, %c0_i32_0 : i32, i32
  }
  func.func @transform_3(%arg0: i32) -> (i32, i32) {
    %c0_i32 = arith.constant 0 : i32
    %c0_i32_0 = arith.constant 0 : i32
    %c0_i32_1 = arith.constant 0 : i32
    return %c0_i32, %c0_i32_0 : i32, i32
  }
  func.func @transform_4(%arg0: i32) -> (i32, i32) {
    %c0_i32 = arith.constant 0 : i32
    %c0_i32_0 = arith.constant 0 : i32
    %c0_i32_1 = arith.constant 0 : i32
    return %c0_i32, %c0_i32_0 : i32, i32
  }
  func.func @transform_5(%arg0: i32) -> (i32, i32, i32) {
    %c0_i32 = arith.constant 0 : i32
    %c0_i32_0 = arith.constant 0 : i32
    %c0_i32_1 = arith.constant 0 : i32
    return %arg0, %c0_i32, %c0_i32_0 : i32, i32, i32
  }
}

</mosaic_0001>

<llo_original>
// kernel: tpu_custom_call.1
$region0: #{tpu_custom_call.1}
  #allocation0 [shape = 'u32[]', space=smem, size = 0x4, offset = 0x4, fixed_abs, tag = 'smem constant byte address 0x4 - core index']
  #allocation1 [shape = 'u32[144,128]{1,0:T(1,128)}', space=vmem, size = 0x12000, scoped, tag = 'internal scratch']
  %s0 = inlined_call_operand.hbm [shape: f32[2,4,290], index: 0, kind: input, shape index: {}]
  %s1 = inlined_call_operand.hbm [shape: f32[4,36], index: 1, kind: input, shape index: {}]
  %s2 = inlined_call_operand.hbm [shape: f32[4,36], index: 2, kind: input, shape index: {}]
  %s3 = inlined_call_operand.vmem [shape: f32[1,256], index: 3, kind: input, shape index: {}]
  %s4 = inlined_call_operand.vmem [shape: f32[1,256], index: 4, kind: input, shape index: {}]
  %s5 = inlined_call_operand.hbm [shape: f32[2,4,256], index: 5, kind: output, shape index: {}]
  %s6 = sld [smem:[#allocation0]]
  $region65: #{tpu_custom_call.1} parent=0
    _
  %s8 = ssub.s32 1, %s6
  %s9 = scalar_select 0, %s8, %s6
  $region1: #{tpu_custom_call.1} parent=0
    #allocation2 [shape = 'u8[12288]{0}', space=vmem, size = 0x3000, scoped, tag = 'input window, operand 0']
    #allocation3 [shape = 's32[2]{0}', space=sflag, size = 0x8, scoped, tag = 'scoped memory for tpu_custom_call.1']
    #allocation4 [shape = 's32[2]{0}', space=sflag, size = 0x8, scoped, tag = 'scoped memory for tpu_custom_call.1']
    #allocation5 [shape = 'u8[2048]{0}', space=vmem, size = 0x800, scoped, tag = 'input window, operand 1, single buffered']
    #allocation6 [shape = 's32[1]{0}', space=sflag, size = 0x4, scoped, tag = 'scoped memory for tpu_custom_call.1']
    #allocation7 [shape = 'u8[2048]{0}', space=vmem, size = 0x800, scoped, tag = 'input window, operand 2, single buffered']
    #allocation8 [shape = 'u8[8192]{0}', space=vmem, size = 0x2000, scoped, tag = 'output window, operand 0']
    %10 = vsyncpa [#allocation3], 0
    %s11 = scalar_lea.sflag [#allocation3], 1
    %12 = vsyncpa %s11, 0
    %13 = vsyncpa [#allocation6], 0
    %14 = vsyncpa [#allocation4], 0
    %s15 = scalar_lea.sflag [#allocation4], 1
    %16 = vsyncpa %s15, 0
    loop: start=0, step=1, limit=4
    $region2: #{tpu_custom_call.1} parent=1 // loop_pre_header
      _
    $region3: #{tpu_custom_call.1} parent=1 // loop_header
      %s18 = sphi 0, %s22
      %p19 = scmp.ge.s32.totalorder %s18, 4
      %s28 = sphi 0, %s30
      %s31 = sphi 0, %s28
      %s32 = sphi 0, %s31
      %s48 = sphi 0, %s32
      %s52 = sphi 0, %s52
      %s54 = sphi 0, %s52
      %s55 = sphi 0, %s54
      %s69 = sphi 0, %s55
      %s73 = sphi 0, %s73
      %s75 = sphi 0, %s73
      %s76 = sphi 0, %s75
      %s90 = sphi 0, %s76
      %s94 = sphi 0, %s94
      %s96 = sphi 0, %s94
      %s97 = sphi 0, %s96
      %s111 = sphi 0, %s97
      %s115 = sphi 0, %s115
      %s117 = sphi 0, %s115
      %s118 = sphi 0, %s117
      %s132 = sphi 0, %s118
      %s138 = sphi 0, %s140
      %s141 = sphi 0, %s138
      %s142 = sphi 0, %s141
      %s158 = sphi 0, %s142
    $region4: #{tpu_custom_call.1} parent=1 // loop_header_branch
      %21 = sbr.rel (%p19) target = $region8
    $region5: #{tpu_custom_call.1} parent=1 // loop_body
      %s23 = ssub.s32 %s18, 1
      %s24 = ssub.s32 %s18, 2
      %s25 = sadd.s32 %s18, 1
      %s26 = ssub.s32 %s18, %s25
      %p27 = scmp.eq.s32.totalorder %s26, 0
      %s29 = sadd.s32 %s28, 1
      %s30 = scalar_select %p27, %s28, %s29
      %p33 = pneg %p27
      %p34 = scmp.eq.s32.totalorder %s18, 1
      %p35 = por %p33, %p34
      %p36 = scmp.ne.s32.totalorder %s28, %s31
      %p37 = scmp.eq.s32.totalorder %s18, 0
      %p38 = por %p36, %p37
      %p39 = scmp.ne.s32.totalorder %s28, %s31
      %p40 = scmp.eq.s32.totalorder %s23, 1
      %p41 = por %p39, %p40
      %p42 = scmp.ne.s32.totalorder %s31, %s32
      %p43 = scmp.eq.s32.totalorder %s23, 0
      %p44 = por %p42, %p43
      %p45 = scmp.ne.s32.totalorder %s31, %s32
      %p46 = scmp.eq.s32.totalorder %s24, 1
      %p47 = por %p45, %p46
      %p49 = scmp.ne.s32.totalorder %s32, %s48
      %p50 = scmp.eq.s32.totalorder %s24, 0
      %p51 = por %p49, %p50
      %s53 = sadd.s32 %s52, 1
      %p56 = scmp.eq.s32.totalorder %s18, 1
      %p57 = scmp.ne.s32.totalorder %s52, %s54
      %p58 = scmp.eq.s32.totalorder %s18, 0
      %p59 = por %p57, %p58
      %p60 = scmp.ne.s32.totalorder %s52, %s54
      %p61 = scmp.eq.s32.totalorder %s23, 1
      %p62 = por %p60, %p61
      %p63 = scmp.ne.s32.totalorder %s54, %s55
      %p64 = scmp.eq.s32.totalorder %s23, 0
      %p65 = por %p63, %p64
      %p66 = scmp.ne.s32.totalorder %s54, %s55
      %p67 = scmp.eq.s32.totalorder %s24, 1
      %p68 = por %p66, %p67
      %p70 = scmp.ne.s32.totalorder %s55, %s69
      %p71 = scmp.eq.s32.totalorder %s24, 0
      %p72 = por %p70, %p71
      %s74 = sadd.s32 %s73, 1
      %p77 = scmp.eq.s32.totalorder %s18, 1
      %p78 = scmp.ne.s32.totalorder %s73, %s75
      %p79 = scmp.eq.s32.totalorder %s18, 0
      %p80 = por %p78, %p79
      %p81 = scmp.ne.s32.totalorder %s73, %s75
      %p82 = scmp.eq.s32.totalorder %s23, 1
      %p83 = por %p81, %p82
      %p84 = scmp.ne.s32.totalorder %s75, %s76
      %p85 = scmp.eq.s32.totalorder %s23, 0
      %p86 = por %p84, %p85
      %p87 = scmp.ne.s32.totalorder %s75, %s76
      %p88 = scmp.eq.s32.totalorder %s24, 1
      %p89 = por %p87, %p88
      %p91 = scmp.ne.s32.totalorder %s76, %s90
      %p92 = scmp.eq.s32.totalorder %s24, 0
      %p93 = por %p91, %p92
      %s95 = sadd.s32 %s94, 1
      %p98 = scmp.eq.s32.totalorder %s18, 1
      %p99 = scmp.ne.s32.totalorder %s94, %s96
      %p100 = scmp.eq.s32.totalorder %s18, 0
      %p101 = por %p99, %p100
      %p102 = scmp.ne.s32.totalorder %s94, %s96
      %p103 = scmp.eq.s32.totalorder %s23, 1
      %p104 = por %p102, %p103
      %p105 = scmp.ne.s32.totalorder %s96, %s97
      %p106 = scmp.eq.s32.totalorder %s23, 0
      %p107 = por %p105, %p106
      %p108 = scmp.ne.s32.totalorder %s96, %s97
      %p109 = scmp.eq.s32.totalorder %s24, 1
      %p110 = por %p108, %p109
      %p112 = scmp.ne.s32.totalorder %s97, %s111
      %p113 = scmp.eq.s32.totalorder %s24, 0
      %p114 = por %p112, %p113
      %s116 = sadd.s32 %s115, 1
      %p119 = scmp.eq.s32.totalorder %s18, 1
      %p120 = scmp.ne.s32.totalorder %s115, %s117
      %p121 = scmp.eq.s32.totalorder %s18, 0
      %p122 = por %p120, %p121
      %p123 = scmp.ne.s32.totalorder %s115, %s117
      %p124 = scmp.eq.s32.totalorder %s23, 1
      %p125 = por %p123, %p124
      %p126 = scmp.ne.s32.totalorder %s117, %s118
      %p127 = scmp.eq.s32.totalorder %s23, 0
      %p128 = por %p126, %p127
      %p129 = scmp.ne.s32.totalorder %s117, %s118
      %p130 = scmp.eq.s32.totalorder %s24, 1
      %p131 = por %p129, %p130
      %p133 = scmp.ne.s32.totalorder %s118, %s132
      %p134 = scmp.eq.s32.totalorder %s24, 0
      %p135 = por %p133, %p134
      %s136 = ssub.s32 %s18, %s25
      %p137 = scmp.eq.s32.totalorder %s136, 0
      %s139 = sadd.s32 %s138, 1
      %s140 = scalar_select %p137, %s138, %s139
      %p143 = pneg %p137
      %p144 = scmp.eq.s32.totalorder %s18, 1
      %p145 = por %p143, %p144
      %p146 = scmp.ne.s32.totalorder %s138, %s141
      %p147 = scmp.eq.s32.totalorder %s18, 0
      %p148 = por %p146, %p147
      %p149 = scmp.ne.s32.totalorder %s138, %s141
      %p150 = scmp.eq.s32.totalorder %s23, 1
      %p151 = por %p149, %p150
      %p152 = scmp.ne.s32.totalorder %s141, %s142
      %p153 = scmp.eq.s32.totalorder %s23, 0
      %p154 = por %p152, %p153
      %p155 = scmp.ne.s32.totalorder %s141, %s142
      %p156 = scmp.eq.s32.totalorder %s24, 1
      %p157 = por %p155, %p156
      %p159 = scmp.ne.s32.totalorder %s142, %s158
      %p160 = scmp.eq.s32.totalorder %s24, 0
      %p161 = por %p159, %p160
      %p162 = scmp.le.s32.totalorder 1, %s18
      %p163 = scmp.lt.s32.totalorder %s18, 3
      %p164 = pnand %p162, %p163
      %p165 = pneg %p164
      // Predicated region
      $region9: #{tpu_custom_call.1} parent=5 // pred_check
        _
      $region10: #{tpu_custom_call.1} parent=5 // pred_check_branch
        %167 = sbr.rel (%p164) target = $region12
      $region11: #{tpu_custom_call.1} parent=5 // pred_region
        %s168 = ssub.s32 %s18, 1
        // Predicated region
        $region13: #{tpu_custom_call.1} parent=11 // pred_check
          %p169 = pneg %p65
        $region14: #{tpu_custom_call.1} parent=11 // pred_check_branch
          %171 = sbr.rel (%p169) target = $region16
        $region15: #{tpu_custom_call.1} parent=11 // pred_region
          %s173 = ssub.s32 64, 64
          %174 = vsyncadd [#allocation6], %s173
          %s176 = sshll.u32 [#allocation5], 4
          %s177 = int_to_ptr.vmem [resolvable:$true] %s176
          %179 = dma.hbm_to_vmem [thread:$0]  %s1, 64, %s177, [#allocation6]
        $region16: #{tpu_custom_call.1} parent=11 // pred_fallthru
          _
        // Predicated region
        $region17: #{tpu_custom_call.1} parent=11 // pred_check
          %p180 = pneg %p86
        $region18: #{tpu_custom_call.1} parent=11 // pred_check_branch
          %182 = sbr.rel (%p180) target = $region20
        $region19: #{tpu_custom_call.1} parent=11 // pred_region
          %s184 = ssub.s32 64, 64
          %185 = vsyncadd [#allocation6], %s184
          %s187 = sshll.u32 [#allocation7], 4
          %s188 = int_to_ptr.vmem [resolvable:$true] %s187
          %190 = dma.hbm_to_vmem [thread:$0]  %s2, 64, %s188, [#allocation6]
        $region20: #{tpu_custom_call.1} parent=11 // pred_fallthru
          _
        // Predicated region
        $region21: #{tpu_custom_call.1} parent=11 // pred_check
          %p191 = pneg %p107
        $region22: #{tpu_custom_call.1} parent=11 // pred_check_branch
          %193 = sbr.rel (%p191) target = $region24
        $region23: #{tpu_custom_call.1} parent=11 // pred_region
          _
        $region24: #{tpu_custom_call.1} parent=11 // pred_fallthru
          _
        // Predicated region
        $region25: #{tpu_custom_call.1} parent=11 // pred_check
          %p194 = pneg %p128
        $region26: #{tpu_custom_call.1} parent=11 // pred_check_branch
          %196 = sbr.rel (%p194) target = $region28
        $region27: #{tpu_custom_call.1} parent=11 // pred_region
          _
        $region28: #{tpu_custom_call.1} parent=11 // pred_fallthru
          _
      $region12: #{tpu_custom_call.1} parent=5 // pred_fallthru
        _
      %p197 = scmp.lt.s32.totalorder %s18, 2
      // Predicated region
      $region29: #{tpu_custom_call.1} parent=5 // pred_check
        %p198 = pneg %p197
      $region30: #{tpu_custom_call.1} parent=5 // pred_check_branch
        %200 = sbr.rel (%p198) target = $region32
      $region31: #{tpu_custom_call.1} parent=5 // pred_region
        // Predicated region
        $region33: #{tpu_custom_call.1} parent=31 // pred_check
          %p201 = pneg %p38
        $region34: #{tpu_custom_call.1} parent=31 // pred_check_branch
          %203 = sbr.rel (%p201) target = $region36
        $region35: #{tpu_custom_call.1} parent=31 // pred_region
          %s204 = sand.u32 %s28, 1
          %s205 = scalar_lea.sflag [#allocation3], %s204
          %s206 = sand.u32 %s28, 1
          %s207 = smul.addr %s206, 12
          %s208 = scalar_lea.vmem [#allocation2], %s207
          %s210 = ssub.s32 192, 192
          %211 = vsyncadd %s205, %s210
          %s212 = smul.addr %s18, 3
          %s213 = smul.addr %s212, 64
          %s214 = scalar_lea.hbm %s0, %s213
          %s216 = sshll.u32 %s208, 4
          %s217 = int_to_ptr.vmem [resolvable:$true] %s216
          %219 = dma.hbm_to_vmem [thread:$0]  %s214, 192, %s217, %s205
        $region36: #{tpu_custom_call.1} parent=31 // pred_fallthru
          _
      $region32: #{tpu_custom_call.1} parent=5 // pred_fallthru
        _
      %p220 = scmp.le.s32.totalorder 1, %s18
      %p221 = scmp.lt.s32.totalorder %s18, 3
      %p222 = pnand %p220, %p221
      %p223 = pneg %p222
      // Predicated region
      $region37: #{tpu_custom_call.1} parent=5 // pred_check
        _
      $region38: #{tpu_custom_call.1} parent=5 // pred_check_branch
        %225 = sbr.rel (%p222) target = $region40
      $region39: #{tpu_custom_call.1} parent=5 // pred_region
        %s226 = ssub.s32 %s18, 1
        %s227 = sand.u32 %s31, 1
        %s228 = scalar_lea.sflag [#allocation3], %s227
        %s229 = sand.u32 %s31, 1
        %s230 = smul.addr %s229, 12
        %s231 = scalar_lea.vmem [#allocation2], %s230
        // Predicated region
        $region41: #{tpu_custom_call.1} parent=39 // pred_check
          %p232 = pneg %p44
        $region42: #{tpu_custom_call.1} parent=39 // pred_check_branch
          %234 = sbr.rel (%p232) target = $region44
        $region43: #{tpu_custom_call.1} parent=39 // pred_region
          %235 = dma.done %s228, 192
        $region44: #{tpu_custom_call.1} parent=39 // pred_fallthru
          _
        // Predicated region
        $region45: #{tpu_custom_call.1} parent=39 // pred_check
          %p236 = pneg %p65
        $region46: #{tpu_custom_call.1} parent=39 // pred_check_branch
          %238 = sbr.rel (%p236) target = $region48
        $region47: #{tpu_custom_call.1} parent=39 // pred_region
          %239 = dma.done [#allocation6], 64
        $region48: #{tpu_custom_call.1} parent=39 // pred_fallthru
          _
        // Predicated region
        $region49: #{tpu_custom_call.1} parent=39 // pred_check
          %p240 = pneg %p86
        $region50: #{tpu_custom_call.1} parent=39 // pred_check_branch
          %242 = sbr.rel (%p240) target = $region52
        $region51: #{tpu_custom_call.1} parent=39 // pred_region
          %243 = dma.done [#allocation6], 64
        $region52: #{tpu_custom_call.1} parent=39 // pred_fallthru
          _
        %s244 = sand.u32 %s31, 1
        %s245 = scalar_lea.sflag [#allocation3], %s244
        %s246 = sand.u32 %s31, 1
        %s247 = smul.addr %s246, 12
        %s248 = scalar_lea.vmem [#allocation2], %s247
        %p249 = pneg %p44
        %p250 = pneg %p41
        %p251 = pneg %p65
        %p252 = pneg %p62
        %p253 = pneg %p86
        %p254 = pneg %p83
        %p255 = pneg %p107
        %p256 = pneg %p104
        %p257 = pneg %p128
        %p258 = pneg %p125
        %p259 = pneg %p154
        %p260 = pneg %p151
        %s261 = sand.u32 %s141, 1
        %s262 = scalar_lea.sflag [#allocation4], %s261
        %s263 = sand.u32 %s141, 1
        %s264 = smul.addr %s263, 8
        %s265 = scalar_lea.vmem [#allocation8], %s264
        %v266 = vld [vmem:[#allocation5] sm:$0xf]
        %v267 = vld [vmem:[#allocation7] sm:$0xf]
        %v268 = vld [vmem:[%s3] sm:$0x3]
        %v269 = vld [vmem:[%s4] sm:$0x3]
        %v270 = vld [vmem:[%s231] sm:$0xff]
        %v271 = vld [vmem:[%s231 + $0x8] sm:$0xf]
        %v273 = vlaneseq
        %v274 = vshrl.u32 %v273, 7
        %v275 = vsub.s32 0, %v274
        %v276 = vrot.slane %v268, %v275
        %v277 = vlaneseq
        %v278 = vshrl.u32 %v277, 7
        %v279 = vsub.s32 1, %v278
        %v280 = vrot.slane %v268, %v279
        %v283 = vcombine.low %v276, %v280
        %v285 = vmul.f32 %v270, %v283
        %v287 = vlaneseq
        %v288 = vshrl.u32 %v287, 7
        %v289 = vsub.s32 0, %v288
        %v290 = vrot.slane %v269, %v289
        %v291 = vlaneseq
        %v292 = vshrl.u32 %v291, 7
        %v293 = vsub.s32 1, %v292
        %v294 = vrot.slane %v269, %v293
        %v295 = vcombine.low %v290, %v294
        %296 = vrot.lane.b32.xlu0 %v295, 2
        %v297 = vpop.permute.xlu0 %296
        %v298 = vrot.slane %v297, 4
        %vm299 = vcmask 15360
        %v300 = vsel %vm299, %v298, %v297
        %v303 = vmul.f32 %v270, %v300
        %v304 = vmul.f32 %v271, %v298
        %305 = vrot.lane.b32.xlu0 %v283, 16
        %v306 = vpop.permute.xlu0 %305
        %v307 = vrot.slane %v306, 4
        %vm308 = vcmask 130048
        %v309 = vsel %vm308, %v307, %v306
        %v312 = vmul.f32 %v270, %v309
        %v313 = vmul.f32 %v271, %v307
        %314 = vrot.lane.b32.xlu0 %v295, 18
        %v315 = vpop.permute.xlu0 %314
        %v316 = vrot.slane %v315, 4
        %vm317 = vcmask 146432
        %v318 = vsel %vm317, %v316, %v315
        %v321 = vmul.f32 %v270, %v318
        %v322 = vmul.f32 %v271, %v316
        %323 = vrot.lane.b32.xlu0 %v283, 32
        %v324 = vpop.permute.xlu0 %323
        %v325 = vrot.slane %v324, 4
        %vm326 = vcmask 261120
        %v327 = vsel %vm326, %v325, %v324
        %v330 = vmul.f32 %v270, %v327
        %v331 = vmul.f32 %v271, %v325
        %332 = vrot.lane.b32.xlu0 %v295, 34
        %v333 = vpop.permute.xlu0 %332
        %v334 = vrot.slane %v333, 4
        %vm335 = vcmask 277504
        %v336 = vsel %vm335, %v334, %v333
        %v339 = vmul.f32 %v270, %v336
        %v340 = vmul.f32 %v271, %v334
        %v342 = vcombine.high %v285, %v285
        %v346 = vcombine.low %v270, %v270
        %v347 = vcombine.low %v271, %v271
        %348 = vrot.lane.b32.xlu0 %v346, 127
        %v349 = vpop.permute.xlu0 %348
        %350 = vrot.lane.b32.xlu0 %v270, 127
        %v351 = vpop.permute.xlu0 %350
        %352 = vrot.lane.b32.xlu0 %v347, 127
        %v353 = vpop.permute.xlu0 %352
        %vm354 = vcmask 1039360
        %v355 = vsel %vm354, %v349, %v351
        %v356 = vsel %vm354, %v351, %v353
        %v361 = vcombine.high %v303, %v303
        %362 = vrot.lane.b32.xlu0 %v303, 126
        %v363 = vpop.permute.xlu0 %362
        %364 = vrot.lane.b32.xlu0 %v361, 126
        %v365 = vpop.permute.xlu0 %364
        %366 = vrot.lane.b32.xlu0 %v304, 126
        %v367 = vpop.permute.xlu0 %366
        %vm368 = vcmask 1031168
        %v369 = vsel %vm368, %v363, %v365
        %v370 = vsel %vm368, %v365, %v367
        %v375 = vcombine.low %v312, %v312
        %v376 = vcombine.low %v313, %v313
        %377 = vrot.lane.b32.xlu0 %v375, 112
        %v378 = vpop.permute.xlu0 %377
        %379 = vrot.lane.b32.xlu0 %v312, 112
        %v380 = vpop.permute.xlu0 %379
        %381 = vrot.lane.b32.xlu0 %v376, 112
        %v382 = vpop.permute.xlu0 %381
        %vm383 = vcmask 916480
        %v384 = vsel %vm383, %v378, %v380
        %v385 = vsel %vm383, %v380, %v382
        %v388 = vcombine.high %v270, %v270
        %389 = vrot.lane.b32.xlu0 %v270, 111
        %v390 = vpop.permute.xlu0 %389
        %391 = vrot.lane.b32.xlu0 %v388, 111
        %v392 = vpop.permute.xlu0 %391
        %393 = vrot.lane.b32.xlu0 %v271, 111
        %v394 = vpop.permute.xlu0 %393
        %vm395 = vcmask 908288
        %v396 = vsel %vm395, %v390, %v392
        %v397 = vsel %vm395, %v392, %v394
        %v402 = vcombine.low %v321, %v321
        %v403 = vcombine.low %v322, %v322
        %404 = vrot.lane.b32.xlu0 %v402, 110
        %v405 = vpop.permute.xlu0 %404
        %406 = vrot.lane.b32.xlu0 %v321, 110
        %v407 = vpop.permute.xlu0 %406
        %408 = vrot.lane.b32.xlu0 %v403, 110
        %v409 = vpop.permute.xlu0 %408
        %vm410 = vcmask 900096
        %v411 = vsel %vm410, %v405, %v407
        %v412 = vsel %vm410, %v407, %v409
        %v417 = vcombine.high %v330, %v330
        %418 = vrot.lane.b32.xlu0 %v330, 96
        %v419 = vpop.permute.xlu0 %418
        %420 = vrot.lane.b32.xlu0 %v417, 96
        %v421 = vpop.permute.xlu0 %420
        %422 = vrot.lane.b32.xlu0 %v331, 96
        %v423 = vpop.permute.xlu0 %422
        %vm424 = vcmask 785408
        %v425 = vsel %vm424, %v419, %v421
        %v426 = vsel %vm424, %v421, %v423
        %429 = vrot.lane.b32.xlu0 %v346, 95
        %v430 = vpop.permute.xlu0 %429
        %431 = vrot.lane.b32.xlu0 %v270, 95
        %v432 = vpop.permute.xlu0 %431
        %433 = vrot.lane.b32.xlu0 %v347, 95
        %v434 = vpop.permute.xlu0 %433
        %vm435 = vcmask 777216
        %v436 = vsel %vm435, %v430, %v432
        %v437 = vsel %vm435, %v432, %v434
        %v442 = vcombine.high %v339, %v339
        %443 = vrot.lane.b32.xlu0 %v339, 94
        %v444 = vpop.permute.xlu0 %443
        %445 = vrot.lane.b32.xlu0 %v442, 94
        %v446 = vpop.permute.xlu0 %445
        %447 = vrot.lane.b32.xlu0 %v340, 94
        %v448 = vpop.permute.xlu0 %447
        %vm449 = vcmask 769024
        %v450 = vsel %vm449, %v444, %v446
        %v451 = vsel %vm449, %v446, %v448
        %vm452 = vcmask 1043456
        %v453 = vsel %vm452, %v285, %v355
        %v454 = vsel %vm452, %v342, %v356
        %v455 = vsel %vm452, %v369, %v384
        %v456 = vsel %vm452, %v370, %v385
        %v457 = vsel %vm452, %v396, %v411
        %v458 = vsel %vm452, %v397, %v412
        %v459 = vsel %vm452, %v425, %v436
        %v460 = vsel %vm452, %v426, %v437
        %vm461 = vcmask 293888
        %v463 = vsel %vm461, %v266, 0
        %v465 = vsel %vm452, %v450, 0
        %v467 = vsel %vm452, %v451, 0
        %469 = vmatprep.subr.mxu0 0.0
        %470 = vmatpush1.msra.mxu0 0.0
        %471 = vmatprep.subr.mxu0 0.0
        %472 = vmatpush1.msra.mxu0 0.0
        %473 = vmatprep.subr.mxu0 0.0
        %474 = vmatpush1.msra.mxu0 0.0
        %475 = vmatprep.subr.mxu0 0.0
        %476 = vmatpush1.msra.mxu0 0.0
        %477 = vmatprep.subr.mxu0 0.0
        %478 = vmatpush1.msra.mxu0 0.0
        %479 = vmatprep.subr.mxu0 0.0
        %480 = vmatpush1.msra.mxu0 0.0
        %481 = vmatprep.subr.mxu0 0.0
        %482 = vmatpush1.msra.mxu0 0.0
        %483 = vmatprep.subr.mxu0 0.0
        %484 = vmatpush1.msra.mxu0 0.0
        %485 = vmatprep.subr.mxu0 0.0
        %486 = vmatpush1.msra.mxu0 0.0
        %487 = vmatprep.subr.mxu0 0.0
        %488 = vmatpush1.msra.mxu0 0.0
        %489 = vmatprep.subr.mxu0 0.0
        %490 = vmatpush1.msra.mxu0 0.0
        %491 = vmatprep.subr.mxu0 %v467
        %492 = vmatpush1.msra.mxu0 %v465
        %493 = vmatprep.subr.mxu0 %v460
        %494 = vmatpush1.msra.mxu0 %v459
        %495 = vmatprep.subr.mxu0 %v458
        %496 = vmatpush1.msra.mxu0 %v457
        %497 = vmatprep.subr.mxu0 %v456
        %498 = vmatpush1.msra.mxu0 %v455
        %499 = vmatprep.subr.mxu0 %v454
        %500 = vmatpush1.msra.mxu0 %v453
        %501 = vmatprep.subr.mxu0 0.0
        %502 = vmatpush2.msra.mxu0 0.0
        %503 = vmatprep.subr.mxu0 0.0
        %504 = vmatpush2.msra.mxu0 0.0
        %505 = vmatprep.subr.mxu0 0.0
        %506 = vmatpush2.msra.mxu0 0.0
        %507 = vmatprep.subr.mxu0 0.0
        %508 = vmatpush2.msra.mxu0 0.0
        %509 = vmatprep.subr.mxu0 0.0
        %510 = vmatpush2.msra.mxu0 0.0
        %511 = vmatprep.subr.mxu0 0.0
        %512 = vmatpush2.msra.mxu0 0.0
        %513 = vmatprep.subr.mxu0 0.0
        %514 = vmatpush2.msra.mxu0 0.0
        %515 = vmatprep.subr.mxu0 0.0
        %516 = vmatpush2.msra.mxu0 0.0
        %517 = vmatprep.subr.mxu0 0.0
        %518 = vmatpush2.msra.mxu0 0.0
        %519 = vmatprep.subr.mxu0 0.0
        %520 = vmatpush2.msra.mxu0 0.0
        %521 = vmatprep.subr.mxu0 0.0
        %522 = vmatpush2.msra.mxu0 0.0
        %523 = vmatprep.subr.mxu0 0.0
        %524 = vmatpush2.msra.mxu0 0.0
        %525 = vmatprep.subr.mxu0 0.0
        %526 = vmatpush2.msra.mxu0 0.0
        %527 = vmatprep.subr.mxu0 0.0
        %528 = vmatpush2.msra.mxu0 0.0
        %529 = vmatprep.subr.mxu0 0.0
        %530 = vmatpush2.msra.mxu0 0.0
        %531 = vmatprep.subr.mxu0 0.0
        %532 = vmatpush2.msra.mxu0 0.0
        %533 = vmatprep.mubr.f32.mxu0 0.0
        %534 = vmatmul.mubr.f32.gmra.mxu0 %v463
        %v535 = vpop.f32.mrf.mxu0
        %v536 = vadd.f32 0.0, %v535
        %v537 = vpop.f32.mrf.mxu0
        %v538 = vadd.f32 0.0, %v537
        %539 = vdwg.mxu0
        %v540 = vsel %vm452, %v536, 0.0
        %v541 = vsel %vm452, %v538, 0.0
        %v542 = vadd.f32 %v540, %v541
        %543 = vadd.xlane.f32.xlu0 %v542
        %v544 = vpop.xlane.xlu0 %543
        %v545 = vmul.f32 %v536, %v536
        %v546 = vmul.f32 %v538, %v538
        %v547 = vsel %vm452, %v545, 0.0
        %v548 = vsel %vm452, %v546, 0.0
        %v549 = vadd.f32 %v547, %v548
        %550 = vadd.xlane.f32.xlu0 %v549
        %v551 = vpop.xlane.xlu0 %550
        %v552 = vmul.f32 %v544, 0.00390625
        %v553 = vmul.f32 %v551, 0.00390625
        %v554 = vmul.f32 %v552, %v552
        %v555 = vsub.f32 %v553, %v554
        %v556 = vmax.f32 %v555, 0.0
        %v557 = vsub.f32 %v536, %v552
        %v558 = vsub.f32 %v538, %v552
        %v559 = vadd.f32 %v556, 1e-05
        %v560 = vrsqrt.pop %v559
        %v561 = vmul.f32 %v557, %v560
        %v562 = vmul.f32 %v558, %v560
        %v563 = vmax.f32 %v561, 0.0
        %v564 = vmax.f32 %v562, 0.0
        %567 = vrot.lane.b32.xlu0 %v563, 17
        %v568 = vpop.permute.xlu0 %567
        %569 = vrot.lane.b32.xlu0 %v564, 17
        %v570 = vpop.permute.xlu0 %569
        %vm571 = vcmask 138240
        %v572 = vsel %vm571, %v568, %v570
        %v576 = vsel %vm571, 0.0, %v568
        %v577 = vsel %vm571, %v570, 0.0
        %v578 = vmul.f32 %v576, %v276
        %v579 = vmul.f32 %v572, %v280
        %580 = vrot.lane.b32.xlu0 %v290, 2
        %v581 = vpop.permute.xlu0 %580
        %582 = vrot.lane.b32.xlu0 %v294, 2
        %v583 = vpop.permute.xlu0 %582
        %v584 = vsel %vm299, %v581, %v583
        %v588 = vmul.f32 %v576, %v581
        %v589 = vmul.f32 %v572, %v584
        %v590 = vmul.f32 %v577, %v583
        %591 = vrot.lane.b32.xlu0 %v276, 16
        %v592 = vpop.permute.xlu0 %591
        %593 = vrot.lane.b32.xlu0 %v280, 16
        %v594 = vpop.permute.xlu0 %593
        %v595 = vsel %vm308, %v592, %v594
        %v599 = vmul.f32 %v576, %v592
        %v600 = vmul.f32 %v572, %v595
        %v601 = vmul.f32 %v577, %v594
        %602 = vrot.lane.b32.xlu0 %v290, 18
        %v603 = vpop.permute.xlu0 %602
        %604 = vrot.lane.b32.xlu0 %v294, 18
        %v605 = vpop.permute.xlu0 %604
        %v606 = vsel %vm317, %v603, %v605
        %v610 = vmul.f32 %v576, %v603
        %v611 = vmul.f32 %v572, %v606
        %v612 = vmul.f32 %v577, %v605
        %613 = vrot.lane.b32.xlu0 %v276, 32
        %v614 = vpop.permute.xlu0 %613
        %615 = vrot.lane.b32.xlu0 %v280, 32
        %v616 = vpop.permute.xlu0 %615
        %v617 = vsel %vm326, %v614, %v616
        %v621 = vmul.f32 %v576, %v614
        %v622 = vmul.f32 %v572, %v617
        %v623 = vmul.f32 %v577, %v616
        %624 = vrot.lane.b32.xlu0 %v290, 34
        %v625 = vpop.permute.xlu0 %624
        %626 = vrot.lane.b32.xlu0 %v294, 34
        %v627 = vpop.permute.xlu0 %626
        %v628 = vsel %vm335, %v625, %v627
        %v632 = vmul.f32 %v576, %v625
        %v633 = vmul.f32 %v572, %v628
        %v634 = vmul.f32 %v577, %v627
        %v637 = vrot.slane %v576, 4
        %v638 = vrot.slane %v572, 4
        %v639 = vrot.slane %v577, 4
        %640 = vrot.lane.b32.xlu0 %v637, 127
        %v641 = vpop.permute.xlu0 %640
        %642 = vrot.lane.b32.xlu0 %v638, 127
        %v643 = vpop.permute.xlu0 %642
        %644 = vrot.lane.b32.xlu0 %v639, 127
        %v645 = vpop.permute.xlu0 %644
        %v646 = vsel %vm354, %v641, %v643
        %v647 = vsel %vm354, %v643, %v645
        %653 = vrot.lane.b32.xlu0 %v588, 126
        %v654 = vpop.permute.xlu0 %653
        %655 = vrot.lane.b32.xlu0 %v589, 126
        %v656 = vpop.permute.xlu0 %655
        %657 = vrot.lane.b32.xlu0 %v590, 126
        %v658 = vpop.permute.xlu0 %657
        %v659 = vsel %vm368, %v654, %v656
        %v660 = vsel %vm368, %v656, %v658
        %v666 = vrot.slane %v599, 4
        %v667 = vrot.slane %v600, 4
        %v668 = vrot.slane %v601, 4
        %669 = vrot.lane.b32.xlu0 %v666, 112
        %v670 = vpop.permute.xlu0 %669
        %671 = vrot.lane.b32.xlu0 %v667, 112
        %v672 = vpop.permute.xlu0 %671
        %673 = vrot.lane.b32.xlu0 %v668, 112
        %v674 = vpop.permute.xlu0 %673
        %v675 = vsel %vm383, %v670, %v672
        %v676 = vsel %vm383, %v672, %v674
        %679 = vrot.lane.b32.xlu0 %v576, 111
        %v680 = vpop.permute.xlu0 %679
        %681 = vrot.lane.b32.xlu0 %v572, 111
        %v682 = vpop.permute.xlu0 %681
        %683 = vrot.lane.b32.xlu0 %v577, 111
        %v684 = vpop.permute.xlu0 %683
        %v685 = vsel %vm395, %v680, %v682
        %v686 = vsel %vm395, %v682, %v684
        %v692 = vrot.slane %v610, 4
        %v693 = vrot.slane %v611, 4
        %v694 = vrot.slane %v612, 4
        %695 = vrot.lane.b32.xlu0 %v692, 110
        %v696 = vpop.permute.xlu0 %695
        %697 = vrot.lane.b32.xlu0 %v693, 110
        %v698 = vpop.permute.xlu0 %697
        %699 = vrot.lane.b32.xlu0 %v694, 110
        %v700 = vpop.permute.xlu0 %699
        %v701 = vsel %vm410, %v696, %v698
        %v702 = vsel %vm410, %v698, %v700
        %708 = vrot.lane.b32.xlu0 %v621, 96
        %v709 = vpop.permute.xlu0 %708
        %710 = vrot.lane.b32.xlu0 %v622, 96
        %v711 = vpop.permute.xlu0 %710
        %712 = vrot.lane.b32.xlu0 %v623, 96
        %v713 = vpop.permute.xlu0 %712
        %v714 = vsel %vm424, %v709, %v711
        %v715 = vsel %vm424, %v711, %v713
        %718 = vrot.lane.b32.xlu0 %v637, 95
        %v719 = vpop.permute.xlu0 %718
        %720 = vrot.lane.b32.xlu0 %v638, 95
        %v721 = vpop.permute.xlu0 %720
        %722 = vrot.lane.b32.xlu0 %v639, 95
        %v723 = vpop.permute.xlu0 %722
        %v724 = vsel %vm435, %v719, %v721
        %v725 = vsel %vm435, %v721, %v723
        %731 = vrot.lane.b32.xlu0 %v632, 94
        %v732 = vpop.permute.xlu0 %731
        %733 = vrot.lane.b32.xlu0 %v633, 94
        %v734 = vpop.permute.xlu0 %733
        %735 = vrot.lane.b32.xlu0 %v634, 94
        %v736 = vpop.permute.xlu0 %735
        %v737 = vsel %vm449, %v732, %v734
        %v738 = vsel %vm449, %v734, %v736
        %v739 = vsel %vm452, %v578, %v646
        %v740 = vsel %vm452, %v579, %v647
        %v741 = vsel %vm452, %v659, %v675
        %v742 = vsel %vm452, %v660, %v676
        %v743 = vsel %vm452, %v685, %v701
        %v744 = vsel %vm452, %v686, %v702
        %v745 = vsel %vm452, %v714, %v724
        %v746 = vsel %vm452, %v715, %v725
        %v748 = vsel %vm461, %v267, 0
        %v750 = vsel %vm452, %v737, 0
        %v752 = vsel %vm452, %v738, 0
        %754 = vmatprep.subr.mxu0 0.0
        %755 = vmatpush1.msra.mxu0 0.0
        %756 = vmatprep.subr.mxu0 0.0
        %757 = vmatpush1.msra.mxu0 0.0
        %758 = vmatprep.subr.mxu0 0.0
        %759 = vmatpush1.msra.mxu0 0.0
        %760 = vmatprep.subr.mxu0 0.0
        %761 = vmatpush1.msra.mxu0 0.0
        %762 = vmatprep.subr.mxu0 0.0
        %763 = vmatpush1.msra.mxu0 0.0
        %764 = vmatprep.subr.mxu0 0.0
        %765 = vmatpush1.msra.mxu0 0.0
        %766 = vmatprep.subr.mxu0 0.0
        %767 = vmatpush1.msra.mxu0 0.0
        %768 = vmatprep.subr.mxu0 0.0
        %769 = vmatpush1.msra.mxu0 0.0
        %770 = vmatprep.subr.mxu0 0.0
        %771 = vmatpush1.msra.mxu0 0.0
        %772 = vmatprep.subr.mxu0 0.0
        %773 = vmatpush1.msra.mxu0 0.0
        %774 = vmatprep.subr.mxu0 0.0
        %775 = vmatpush1.msra.mxu0 0.0
        %776 = vmatprep.subr.mxu0 %v752
        %777 = vmatpush1.msra.mxu0 %v750
        %778 = vmatprep.subr.mxu0 %v746
        %779 = vmatpush1.msra.mxu0 %v745
        %780 = vmatprep.subr.mxu0 %v744
        %781 = vmatpush1.msra.mxu0 %v743
        %782 = vmatprep.subr.mxu0 %v742
        %783 = vmatpush1.msra.mxu0 %v741
        %784 = vmatprep.subr.mxu0 %v740
        %785 = vmatpush1.msra.mxu0 %v739
        %786 = vmatprep.subr.mxu0 0.0
        %787 = vmatpush2.msra.mxu0 0.0
        %788 = vmatprep.subr.mxu0 0.0
        %789 = vmatpush2.msra.mxu0 0.0
        %790 = vmatprep.subr.mxu0 0.0
        %791 = vmatpush2.msra.mxu0 0.0
        %792 = vmatprep.subr.mxu0 0.0
        %793 = vmatpush2.msra.mxu0 0.0
        %794 = vmatprep.subr.mxu0 0.0
        %795 = vmatpush2.msra.mxu0 0.0
        %796 = vmatprep.subr.mxu0 0.0
        %797 = vmatpush2.msra.mxu0 0.0
        %798 = vmatprep.subr.mxu0 0.0
        %799 = vmatpush2.msra.mxu0 0.0
        %800 = vmatprep.subr.mxu0 0.0
        %801 = vmatpush2.msra.mxu0 0.0
        %802 = vmatprep.subr.mxu0 0.0
        %803 = vmatpush2.msra.mxu0 0.0
        %804 = vmatprep.subr.mxu0 0.0
        %805 = vmatpush2.msra.mxu0 0.0
        %806 = vmatprep.subr.mxu0 0.0
        %807 = vmatpush2.msra.mxu0 0.0
        %808 = vmatprep.subr.mxu0 0.0
        %809 = vmatpush2.msra.mxu0 0.0
        %810 = vmatprep.subr.mxu0 0.0
        %811 = vmatpush2.msra.mxu0 0.0
        %812 = vmatprep.subr.mxu0 0.0
        %813 = vmatpush2.msra.mxu0 0.0
        %814 = vmatprep.subr.mxu0 0.0
        %815 = vmatpush2.msra.mxu0 0.0
        %816 = vmatprep.subr.mxu0 0.0
        %817 = vmatpush2.msra.mxu0 0.0
        %818 = vmatprep.mubr.f32.mxu0 0.0
        %819 = vmatmul.mubr.f32.gmra.mxu0 %v748
        %v820 = vpop.f32.mrf.mxu0
        %v821 = vadd.f32 0.0, %v820
        %v822 = vpop.f32.mrf.mxu0
        %v823 = vadd.f32 0.0, %v822
        %824 = vdwg.mxu0
        %v825 = vsel %vm452, %v821, 0.0
        %v826 = vsel %vm452, %v823, 0.0
        %v827 = vadd.f32 %v825, %v826
        %828 = vadd.xlane.f32.xlu0 %v827
        %v829 = vpop.xlane.xlu0 %828
        %v830 = vmul.f32 %v821, %v821
        %v831 = vmul.f32 %v823, %v823
        %v832 = vsel %vm452, %v830, 0.0
        %v833 = vsel %vm452, %v831, 0.0
        %v834 = vadd.f32 %v832, %v833
        %835 = vadd.xlane.f32.xlu0 %v834
        %v836 = vpop.xlane.xlu0 %835
        %v837 = vmul.f32 %v829, 0.00390625
        %v838 = vmul.f32 %v836, 0.00390625
        %v839 = vmul.f32 %v837, %v837
        %v840 = vsub.f32 %v838, %v839
        %v841 = vmax.f32 %v840, 0.0
        %v842 = vsub.f32 %v821, %v837
        %v843 = vsub.f32 %v823, %v837
        %v844 = vadd.f32 %v841, 1e-05
        %v845 = vrsqrt.pop %v844
        %v846 = vmul.f32 %v842, %v845
        %v847 = vmul.f32 %v843, %v845
        %v850 = vcombine.low %v846, %v847
        %851 = vrot.lane.b32.xlu0 %v850, 17
        %v852 = vpop.permute.xlu0 %851
        %v853 = vrot.slane %v852, 4
        %v854 = vsel %vm571, %v853, %v852
        %v857 = vadd.f32 %v270, %v854
        %v858 = vadd.f32 %v271, %v853
        %861 = vrot.lane.b32.xlu0 %v857, 111
        %v862 = vpop.permute.xlu0 %861
        %863 = vrot.lane.b32.xlu0 %v858, 111
        %v864 = vpop.permute.xlu0 %863
        %v865 = vrot.slane %v862, 4
        %v866 = vrot.slane %v864, 4
        %v867 = vsel %vm452, %v865, %v866
        %v868 = vsel %vm395, %v862, %v867
        %870 = vst [vmem:[%s265] sm:$0xff] %v868
        %s871 = sand.u32 %s141, 1
        %s872 = scalar_lea.sflag [#allocation4], %s871
        %s873 = sand.u32 %s141, 1
        %s874 = smul.addr %s873, 8
        %s875 = scalar_lea.vmem [#allocation8], %s874
        // Predicated region
        $region53: #{tpu_custom_call.1} parent=39 // pred_check
          %p876 = pneg %p151
        $region54: #{tpu_custom_call.1} parent=39 // pred_check_branch
          %878 = sbr.rel (%p876) target = $region56
        $region55: #{tpu_custom_call.1} parent=39 // pred_region
          %s880 = ssub.s32 128, 128
          %881 = vsyncadd %s872, %s880
          %s882 = smul.addr %s23, 2
          %s883 = smul.addr %s882, 64
          %s884 = scalar_lea.hbm %s5, %s883
          %s886 = sshll.u32 %s875, 4
          %s887 = int_to_ptr.vmem [resolvable:$true] %s886
          %889 = dma.vmem_to_hbm [thread:$0]  %s887, 128, %s884, %s872
        $region56: #{tpu_custom_call.1} parent=39 // pred_fallthru
          _
      $region40: #{tpu_custom_call.1} parent=5 // pred_fallthru
        _
      %p890 = scmp.le.s32.totalorder 2, %s18
      // Predicated region
      $region57: #{tpu_custom_call.1} parent=5 // pred_check
        %p891 = pneg %p890
      $region58: #{tpu_custom_call.1} parent=5 // pred_check_branch
        %893 = sbr.rel (%p891) target = $region60
      $region59: #{tpu_custom_call.1} parent=5 // pred_region
        %s894 = ssub.s32 %s18, 2
        // Predicated region
        $region61: #{tpu_custom_call.1} parent=59 // pred_check
          %p895 = pneg %p157
        $region62: #{tpu_custom_call.1} parent=59 // pred_check_branch
          %897 = sbr.rel (%p895) target = $region64
        $region63: #{tpu_custom_call.1} parent=59 // pred_region
          %s898 = sand.u32 %s142, 1
          %s899 = scalar_lea.sflag [#allocation4], %s898
          %s900 = sand.u32 %s142, 1
          %s901 = smul.addr %s900, 8
          %s902 = scalar_lea.vmem [#allocation8], %s901
          %903 = dma.done %s899, 128
        $region64: #{tpu_custom_call.1} parent=59 // pred_fallthru
          _
      $region60: #{tpu_custom_call.1} parent=5 // pred_fallthru
        _
    $region6: #{tpu_custom_call.1} parent=1 // loop_footer
      %s22 = sadd.s32 1, %s18
    $region7: #{tpu_custom_call.1} parent=1 // loop_footer_branch
      %17 = sbr.rel target = $region3
    $region8: #{tpu_custom_call.1} parent=1 // loop_exit
      _
    %904 = vsyncpa [#allocation3], 1
    %s905 = scalar_lea.sflag [#allocation3], 1
    %906 = vsyncpa %s905, 1
    %907 = vsyncpa [#allocation6], 1
    %908 = vsyncpa [#allocation4], 1
    %s909 = scalar_lea.sflag [#allocation4], 1
    %910 = vsyncpa %s909, 1

</llo_original>
